<compile_context>
chip_gen: v6e
topology: v6e:2x2x1
jax: 0.10.0
libtpu: 0.0.40
codegen_flags: <defaults>
</compile_context>

<pallas_src>
import jax
import jax.numpy as jnp
from jax.experimental import pallas as pl
from jax.experimental.pallas import tpu as pltpu


# ---------------------------------------------------------------------------
# Pallas kernel: per-sample CLIP score 1 - softmax(100*cos)[last prompt]
# ---------------------------------------------------------------------------
def _make_clip_score_kernel(batch: int, tb: int, text_count: int):
    """Builds the kernel with the true batch size / tile size baked in."""
    eps = 1e-12  # keeps padded zero rows finite; negligible for real rows

    def kernel(img_ref, txtn_ref, out_ref):
        pid = pl.program_id(0)

        img = img_ref[...]                                   # (TB, D) stream dtype

        # ||img_b||^2 laid out lane-dense as (1, TB): ones(1,D) . (img*img)^T.
        # Squares stay in the streaming dtype; accumulation is f32 on the MXU.
        ones_row = jnp.ones((1, img.shape[1]), img.dtype)
        sumsq = jax.lax.dot_general(
            ones_row, img * img, (((1,), (1,)), ((), ())),
            preferred_element_type=jnp.float32)              # (1, TB) f32
        scale = 100.0 * jax.lax.rsqrt(sumsq + eps)           # (1, TB) f32

        # (T, TB) logits: prompts on sublanes, batch on lanes.
        raw = jax.lax.dot_general(
            txtn_ref[...], img, (((1,), (1,)), ((), ())),
            preferred_element_type=jnp.float32)              # (T, TB) f32
        logits = raw * scale

        # Softmax over prompts (sublane axis); only the last prompt's prob is
        # needed, so the full probs matrix is never materialized.
        m = jnp.max(logits, axis=0, keepdims=True)           # (1, TB)
        e = jnp.exp(logits - m)                               # (T, TB)
        denom = jnp.sum(e, axis=0, keepdims=True)             # (1, TB)
        p_last = e[text_count - 1:text_count, :] * pl.reciprocal(
            denom, approx=True)                               # (1, TB)

        # Per-sample score, padded batch columns masked to 0; lane-dense store.
        col = jax.lax.broadcasted_iota(jnp.int32, (1, tb), 1) + pid * tb
        out_ref[...] = jnp.where(col < batch, 1.0 - p_last, 0.0)

    return kernel


def _choose_tile(batch: int, d: int, itemsize: int, tb=None):
    """Pick (tile, padded_batch). Tiles are multiples of 128 unless the whole
    (8-padded) batch fits in a single tile."""
    b_up8 = pl.cdiv(batch, 8) * 8
    # Double-buffered image tile budget: ~8 MiB leaves headroom under v5e's
    # 16 MiB default scoped VMEM (v6e/v7x default to 32 MiB scoped).
    budget = 8 * 1024 * 1024
    cap = budget // (2 * d * itemsize)
    cap = min(2048, max(128, (cap // 128) * 128))
    if tb is None:
        tb = cap
    if b_up8 <= tb:
        return b_up8, b_up8                      # single tile, full batch
    tb = min(max(128, (int(tb) // 128) * 128), cap)
    b_pad = pl.cdiv(batch, tb) * tb
    return tb, b_pad


def clip_score_pallas(img_feats: jax.Array, txt_feats: jax.Array,
                      *, tb=None, compute_dtype=jnp.bfloat16) -> jax.Array:
    """score = mean_b(1 - softmax(100 * cos_sim(img_b, txt))[last prompt])."""
    B, D = img_feats.shape
    T, D2 = txt_feats.shape
    assert D == D2, (img_feats.shape, txt_feats.shape)

    # Normalize the (tiny) text features once in plain JAX in f32, then cast
    # to the streaming/compute dtype. They stay resident in VMEM in-kernel.
    txt_n = txt_feats.astype(jnp.float32)
    txt_n = txt_n * jax.lax.rsqrt(
        jnp.sum(txt_n * txt_n, axis=-1, keepdims=True) + 1e-12)
    txt_n = txt_n.astype(compute_dtype)

    img_feats = img_feats.astype(compute_dtype)
    itemsize = jnp.dtype(compute_dtype).itemsize

    tb, b_pad = _choose_tile(B, D, itemsize, tb)
    if b_pad != B:
        img_feats = jnp.pad(img_feats, ((0, b_pad - B), (0, 0)))
    num_tiles = b_pad // tb

    kernel = _make_clip_score_kernel(batch=B, tb=tb, text_count=T)

    per_sample = pl.pallas_call(
        kernel,
        out_shape=jax.ShapeDtypeStruct((1, b_pad), jnp.float32),
        grid_spec=pltpu.PrefetchScalarGridSpec(
            num_scalar_prefetch=0,
            grid=(num_tiles,),
            in_specs=[
                # Image feature tile streamed per grid step (double-buffered).
                # TODO(synk): add pipeline_mode=pl.Buffered(3) if profiling
                # still shows DMA gaps at the chosen tile size.
                pl.BlockSpec((tb, D), lambda i: (i, 0)),
                # Normalized text features, constant block -> resident in VMEM.
                pl.BlockSpec((T, D), lambda i: (0, 0)),
            ],
            # Per-tile lane-dense block of per-sample scores; no resident
            # accumulator, so the grid axis is truly parallel (uses both
            # TensorCores on v7x).
            out_specs=pl.BlockSpec((1, tb), lambda i: (0, i)),
        ),
        compiler_params=pltpu.CompilerParams(
            dimension_semantics=("parallel",)),
    )(img_feats, txt_n)

    # Final mean over the true batch (padded columns are already zero).
    return jnp.sum(per_sample) * (1.0 / B)


# ---------------------------------------------------------------------------
# Glue (plain JAX): preprocessing + stand-in image encoder
# ---------------------------------------------------------------------------
_CLIP_MEAN = jnp.array([0.48145466, 0.4578275, 0.40821073], jnp.float32)
_CLIP_STD = jnp.array([0.26862954, 0.26130258, 0.27577711], jnp.float32)


def _preprocess(x):
    # img_resize: bilinear resize to 224x224 ; clip_normalizer: (x - mean)/std
    B = x.shape[0]
    img = jax.image.resize(x, (B, 3, 224, 224), method="bilinear")
    img = (img - _CLIP_MEAN.reshape(1, 3, 1, 1)) / _CLIP_STD.reshape(1, 3, 1, 1)
    return img


def _encode_image_standin(img, enc_w):
    # TODO(synk): model.encode_image is a pretrained CLIP ViT with no in-module
    # weights; stand-in = global average pool + deterministic linear projection.
    pooled = jnp.mean(img, axis=(2, 3))              # (B, 3)
    return pooled @ enc_w                            # (B, D)


def l_clip_from_feature(x, text_features, enc_w, *, tb=None,
                        compute_dtype=jnp.bfloat16):
    """Forward pass of L_clip_from_feature (score averaged over the batch)."""
    img = _preprocess(x)
    img_feats = _encode_image_standin(img, enc_w)
    return clip_score_pallas(img_feats, text_features, tb=tb,
                             compute_dtype=compute_dtype)


# ---------------------------------------------------------------------------
# Pure-JAX references for correctness checking.
# ---------------------------------------------------------------------------
def _score_reference(img_feats, text_features):
    i_n = img_feats / jnp.linalg.norm(img_feats, axis=-1, keepdims=True)
    t_n = text_features / jnp.linalg.norm(text_features, axis=-1, keepdims=True)
    sim = jax.nn.softmax(100.0 * i_n @ t_n.T, axis=-1)
    return jnp.mean(1.0 - sim[:, -1])


def _score_reference_bf16_stream(img_feats, text_features):
    """Reference that mirrors the kernel's bf16 streaming (isolates kernel math
    from the intentional bf16 quantization of the inputs)."""
    t = text_features.astype(jnp.float32)
    t = t / jnp.linalg.norm(t, axis=-1, keepdims=True)
    t = t.astype(jnp.bfloat16).astype(jnp.float32)
    i = img_feats.astype(jnp.bfloat16).astype(jnp.float32)
    i = i / jnp.linalg.norm(i, axis=-1, keepdims=True)
    sim = jax.nn.softmax(100.0 * i @ t.T, axis=-1)
    return jnp.mean(1.0 - sim[:, -1])


if __name__ == "__main__":
    key = jax.random.PRNGKey(0)
    kx, kt, kw, kf = jax.random.split(key, 4)

    B, C, H, W = 2, 3, 16, 16       # images (NCHW), values in [0, 1]
    T, D = 8, 32                    # text prompts x feature dim

    x = jax.random.uniform(kx, (B, C, H, W), dtype=jnp.float32)
    text_features = jax.random.normal(kt, (T, D), dtype=jnp.float32)
    enc_w = 0.1 * jax.random.normal(kw, (C, D), dtype=jnp.float32)

    # --- Full forward pass (default bf16 streaming, single tile after padding
    # B=2 -> 8). Compare against a reference with the same bf16 input rounding
    # (isolates kernel math; remaining delta is the approx EUP reciprocal).
    score = jax.block_until_ready(l_clip_from_feature(x, text_features, enc_w))
    img_feats = _encode_image_standin(_preprocess(x), enc_w)
    ref_q = jax.block_until_ready(
        _score_reference_bf16_stream(img_feats, text_features))
    assert score.shape == (), f"expected scalar, got {score.shape}"
    assert jnp.allclose(score, ref_q, atol=5e-3, rtol=5e-3), (score, ref_q)

    # --- Multi-tile "parallel" path with masked padded tail, full f32 compute
    # (tight tolerance vs the exact f32 reference): B=300, tb=128 -> 3 tiles,
    # 84 masked padding columns.
    big_feats = jax.random.normal(kf, (300, D), dtype=jnp.float32)
    want = jax.block_until_ready(_score_reference(big_feats, text_features))
    got32 = jax.block_until_ready(
        clip_score_pallas(big_feats, text_features, tb=128,
                          compute_dtype=jnp.float32))
    assert jnp.allclose(got32, want, atol=2e-3, rtol=2e-3), (got32, want)

    # --- Same multi-tile path with the default bf16 streaming (perf config),
    # checked against the bf16-rounded reference.
    want_q = jax.block_until_ready(
        _score_reference_bf16_stream(big_feats, text_features))
    got16 = jax.block_until_ready(
        clip_score_pallas(big_feats, text_features, tb=128))
    assert jnp.allclose(got16, want_q, atol=5e-3, rtol=5e-3), (got16, want_q)

    print("KERNEL_OK")
</pallas_src>

<mosaic_0001>
module attributes {stable_mosaic.version = 11 : i64} {
  func.func @kernel(%arg0: i32, %arg1: memref<8x32xbf16, #tpu.memory_space<vmem>>, %arg2: memref<8x32xbf16, #tpu.memory_space<vmem>>, %arg3: memref<1x8xf32, #tpu.memory_space<vmem>>) attributes {dimension_semantics = [#tpu.dimension_semantics<parallel>], iteration_bounds = array<i64: 1>, scalar_prefetch = 0 : i64, scratch_operands = 0 : i64, tpu.core_type = #tpu.core_type<tc>, window_params = [{transform_indices = @transform_0, window_bounds = array<i64: 8, 32>}, {pipeline_mode = #tpu.pipeline_mode<synchronous>, transform_indices = @transform_1, window_bounds = array<i64: 8, 32>}, {transform_indices = @transform_2, window_bounds = array<i64: 1, 8>}]} {
    %c0 = arith.constant 0 : index
    %c0_0 = arith.constant 0 : index
    %0 = vector.load %arg1[%c0, %c0_0] : memref<8x32xbf16, #tpu.memory_space<vmem>>, vector<8x32xbf16>
    %cst = arith.constant 1.000000e+00 : bf16
    %1 = vector.broadcast %cst : bf16 to vector<1x32xbf16>
    %2 = arith.mulf %0, %0 : vector<8x32xbf16>
    %cst_1 = arith.constant dense<0.000000e+00> : vector<1x8xf32>
    %3 = tpu.matmul %1, %2, %cst_1 {dimension_numbers = #tpu.dot_dimension_numbers<[1], [1], [0], [0], [0, 0, 1, 0], [], []>} : vector<1x32xbf16>, vector<8x32xbf16>, vector<1x8xf32> -> vector<1x8xf32>
    %cst_2 = arith.constant 9.99999996E-13 : f32
    %4 = vector.broadcast %cst_2 : f32 to vector<1x8xf32>
    %5 = arith.addf %3, %4 : vector<1x8xf32>
    %6 = math.rsqrt %5 : vector<1x8xf32>
    %cst_3 = arith.constant 1.000000e+02 : f32
    %7 = vector.broadcast %cst_3 : f32 to vector<1x8xf32>
    %8 = arith.mulf %7, %6 : vector<1x8xf32>
    %c0_4 = arith.constant 0 : index
    %c0_5 = arith.constant 0 : index
    %9 = vector.load %arg2[%c0_4, %c0_5] : memref<8x32xbf16, #tpu.memory_space<vmem>>, vector<8x32xbf16>
    %cst_6 = arith.constant dense<0.000000e+00> : vector<8x8xf32>
    %10 = tpu.matmul %9, %0, %cst_6 {dimension_numbers = #tpu.dot_dimension_numbers<[1], [1], [0], [0], [0, 0, 1, 0], [], []>} : vector<8x32xbf16>, vector<8x32xbf16>, vector<8x8xf32> -> vector<8x8xf32>
    %11 = vector.broadcast %8 : vector<1x8xf32> to vector<8x8xf32>
    %12 = arith.mulf %10, %11 : vector<8x8xf32>
    %cst_7 = arith.constant dense<0xFF800000> : vector<8xf32>
    %13 = vector.multi_reduction <maximumf>, %12, %cst_7 [0] : vector<8x8xf32> to vector<8xf32>
    %14 = vector.shape_cast %13 : vector<8xf32> to vector<1x8xf32>
    %15 = vector.broadcast %14 : vector<1x8xf32> to vector<8x8xf32>
    %16 = arith.subf %12, %15 : vector<8x8xf32>
    %17 = math.exp %16 : vector<8x8xf32>
    %cst_8 = arith.constant dense<0.000000e+00> : vector<8xf32>
    %18 = vector.multi_reduction <add>, %17, %cst_8 [0] : vector<8x8xf32> to vector<8xf32>
    %19 = vector.shape_cast %18 : vector<8xf32> to vector<1x8xf32>
    %20 = vector.extract_strided_slice %17 {offsets = [7, 0], sizes = [1, 8], strides = [1, 1]} : vector<8x8xf32> to vector<1x8xf32>
    %21 = tpu.reciprocal %19 {approx = true} : vector<1x8xf32> -> vector<1x8xf32>
    %22 = arith.mulf %20, %21 : vector<1x8xf32>
    %23 = tpu.iota {dimensions = array<i32: 1>} : vector<1x8xi32>
    %c8_i32 = arith.constant 8 : i32
    %24 = arith.muli %arg0, %c8_i32 : i32
    %25 = vector.broadcast %24 : i32 to vector<1x8xi32>
    %26 = arith.addi %23, %25 : vector<1x8xi32>
    %c2_i32 = arith.constant 2 : i32
    %27 = vector.broadcast %c2_i32 : i32 to vector<1x8xi32>
    %28 = arith.cmpi slt, %26, %27 : vector<1x8xi32>
    %cst_9 = arith.constant 1.000000e+00 : f32
    %29 = vector.broadcast %cst_9 : f32 to vector<1x8xf32>
    %30 = arith.subf %29, %22 : vector<1x8xf32>
    %cst_10 = arith.constant 0.000000e+00 : f32
    %31 = vector.broadcast %cst_10 : f32 to vector<1x8xf32>
    %32 = arith.select %28, %30, %31 : vector<1x8xi1>, vector<1x8xf32>
    %c0_11 = arith.constant 0 : index
    %c0_12 = arith.constant 0 : index
    %33 = vector.load %arg3[%c0_11, %c0_12] : memref<1x8xf32, #tpu.memory_space<vmem>>, vector<1x8xf32>
    tpu.vector_store %arg3[%c0_11, %c0_12], %32 {strides = array<i32>} : memref<1x8xf32, #tpu.memory_space<vmem>>, vector<1x8xf32>,
    return
  }
  func.func @transform_0(%arg0: i32) -> (i32, i32) {
    %c0_i32 = arith.constant 0 : i32
    %c0_i32_0 = arith.constant 0 : i32
    return %arg0, %c0_i32 : i32, i32
  }
  func.func @transform_1(%arg0: i32) -> (i32, i32) {
    %c0_i32 = arith.constant 0 : i32
    %c0_i32_0 = arith.constant 0 : i32
    %c0_i32_1 = arith.constant 0 : i32
    return %c0_i32, %c0_i32_0 : i32, i32
  }
  func.func @transform_2(%arg0: i32) -> (i32, i32) {
    %c0_i32 = arith.constant 0 : i32
    %c0_i32_0 = arith.constant 0 : i32
    return %c0_i32, %arg0 : i32, i32
  }
}

</mosaic_0001>

<llo_original>
// kernel: tpu_custom_call.1
$region0: #{tpu_custom_call.1}
  #allocation0 [shape = 'u32[]', space=smem, size = 0x4, offset = 0x4, fixed_abs, tag = 'smem constant byte address 0x4 - core index']
  #allocation1 [shape = 'u32[144,128]{1,0:T(1,128)}', space=vmem, size = 0x12000, scoped, tag = 'internal scratch']
  %s0 = inlined_call_operand.hbm [shape: bf16[8,32], index: 0, kind: input, shape index: {}]
  %s1 = inlined_call_operand.hbm [shape: bf16[8,32], index: 1, kind: input, shape index: {}]
  %s2 = inlined_call_operand.hbm [shape: f32[1,8], index: 2, kind: output, shape index: {}]
  %s3 = sld [smem:[#allocation0]]
  $region26: #{tpu_custom_call.1} parent=0
    _
  %s5 = ssub.s32 1, %s3
  %s6 = scalar_select 0, %s5, %s3
  $region1: #{tpu_custom_call.1} parent=0
    #allocation2 [shape = 'u8[2048]{0}', space=vmem, size = 0x800, scoped, tag = 'input window, operand 0, single buffered']
    #allocation3 [shape = 's32[1]{0}', space=sflag, size = 0x4, scoped, tag = 'scoped memory for tpu_custom_call.1']
    #allocation4 [shape = 's32[1]{0}', space=sflag, size = 0x4, scoped, tag = 'scoped memory for tpu_custom_call.1']
    #allocation5 [shape = 'u8[2048]{0}', space=vmem, size = 0x800, scoped, tag = 'input window, operand 1, single buffered']
    #allocation6 [shape = 's32[1]{0}', space=sflag, size = 0x4, scoped, tag = 'scoped memory for tpu_custom_call.1']
    #allocation7 [shape = 'u8[512]{0}', space=vmem, size = 0x400, scoped, tag = 'output window, operand 0, single buffered']
    %7 = vsyncpa [#allocation3], 0
    %8 = vsyncpa [#allocation6], 0
    %9 = vsyncpa [#allocation4], 0
    // Predicated region
    $region2: #{tpu_custom_call.1} parent=1 // pred_check
      _
    $region3: #{tpu_custom_call.1} parent=1 // pred_check_branch
      %11 = sbr.rel (0) target = $region5
    $region4: #{tpu_custom_call.1} parent=1 // pred_region
      %s13 = ssub.s32 64, 64
      %14 = vsyncadd [#allocation3], %s13
      %s16 = sshll.u32 [#allocation2], 4
      %s17 = int_to_ptr.vmem [resolvable:$true] %s16
      %19 = dma.hbm_to_vmem [thread:$0]  %s0, 64, %s17, [#allocation3]
    $region5: #{tpu_custom_call.1} parent=1 // pred_fallthru
      _
    // Predicated region
    $region6: #{tpu_custom_call.1} parent=1 // pred_check
      _
    $region7: #{tpu_custom_call.1} parent=1 // pred_check_branch
      %21 = sbr.rel (0) target = $region9
    $region8: #{tpu_custom_call.1} parent=1 // pred_region
      %s23 = ssub.s32 64, 64
      %24 = vsyncadd [#allocation6], %s23
      %s26 = sshll.u32 [#allocation5], 4
      %s27 = int_to_ptr.vmem [resolvable:$true] %s26
      %29 = dma.hbm_to_vmem [thread:$0]  %s1, 64, %s27, [#allocation6]
    $region9: #{tpu_custom_call.1} parent=1 // pred_fallthru
      _
    // Predicated region
    $region10: #{tpu_custom_call.1} parent=1 // pred_check
      _
    $region11: #{tpu_custom_call.1} parent=1 // pred_check_branch
      %31 = sbr.rel (0) target = $region13
    $region12: #{tpu_custom_call.1} parent=1 // pred_region
      %32 = dma.done [#allocation3], 64
    $region13: #{tpu_custom_call.1} parent=1 // pred_fallthru
      _
    // Predicated region
    $region14: #{tpu_custom_call.1} parent=1 // pred_check
      _
    $region15: #{tpu_custom_call.1} parent=1 // pred_check_branch
      %34 = sbr.rel (0) target = $region17
    $region16: #{tpu_custom_call.1} parent=1 // pred_region
      %35 = dma.done [#allocation6], 64
    $region17: #{tpu_custom_call.1} parent=1 // pred_fallthru
      _
    %v38 = vld [vmem:[#allocation2] sm:$0xf]
    %v39 = vmul.bf16 %v38, %v38
    %vm40 = vcmask 261120
    %v42 = vsel %vm40, 1065369472, 0
    %v45 = vsel %vm40, %v39, 0
    %47 = vmatprep.subr.bf16.mxu0 0
    %48 = vmatpush1.bf16.xpose.msra.mxu0 0
    %49 = vmatprep.subr.bf16.mxu0 0
    %50 = vmatpush1.bf16.xpose.msra.mxu0 0
    %51 = vmatprep.subr.bf16.mxu0 0
    %52 = vmatpush1.bf16.xpose.msra.mxu0 0
    %53 = vmatprep.subr.bf16.mxu0 0
    %54 = vmatpush1.bf16.xpose.msra.mxu0 0
    %55 = vmatprep.subr.bf16.mxu0 0
    %56 = vmatpush1.bf16.xpose.msra.mxu0 0
    %57 = vmatprep.subr.bf16.mxu0 0
    %58 = vmatpush1.bf16.xpose.msra.mxu0 0
    %59 = vmatprep.subr.bf16.mxu0 0
    %60 = vmatpush1.bf16.xpose.msra.mxu0 0
    %61 = vmatprep.subr.bf16.mxu0 0
    %62 = vmatpush1.bf16.xpose.msra.mxu0 %v45
    %63 = vmatprep.subr.bf16.mxu0 0
    %64 = vmatpush2.bf16.xpose.msra.mxu0 0
    %65 = vmatprep.subr.bf16.mxu0 0
    %66 = vmatpush2.bf16.xpose.msra.mxu0 0
    %67 = vmatprep.subr.bf16.mxu0 0
    %68 = vmatpush2.bf16.xpose.msra.mxu0 0
    %69 = vmatprep.subr.bf16.mxu0 0
    %70 = vmatpush2.bf16.xpose.msra.mxu0 0
    %71 = vmatprep.subr.bf16.mxu0 0
    %72 = vmatpush2.bf16.xpose.msra.mxu0 0
    %73 = vmatprep.subr.bf16.mxu0 0
    %74 = vmatpush2.bf16.xpose.msra.mxu0 0
    %75 = vmatprep.subr.bf16.mxu0 0
    %76 = vmatpush2.bf16.xpose.msra.mxu0 0
    %77 = vmatprep.subr.bf16.mxu0 0
    %78 = vmatpush2.bf16.xpose.msra.mxu0 0
    %79 = vmatprep.mubr.bf16.mxu0 0
    %80 = vmatmul.mubr.bf16.gmra.mxu0 %v42
    %v81 = vpop.f32.mrf.mxu0
    %v82 = vadd.f32 1e-12, %v81
    %v83 = vpop.f32.mrf.mxu0
    %v84 = vpop.f32.mrf.mxu0
    %v85 = vpop.f32.mrf.mxu0
    %86 = vdwg.mxu0
    %v87 = vrsqrt.pop %v82
    %v88 = vmul.f32 %v87, 100.0
    %v89 = vld [vmem:[#allocation5] sm:$0xf]
    %v91 = vsel %vm40, %v89, 0
    %v94 = vsel %vm40, %v38, 0
    %96 = vmatprep.subr.bf16.mxu0 0
    %97 = vmatpush1.bf16.xpose.msra.mxu0 0
    %98 = vmatprep.subr.bf16.mxu0 0
    %99 = vmatpush1.bf16.xpose.msra.mxu0 0
    %100 = vmatprep.subr.bf16.mxu0 0
    %101 = vmatpush1.bf16.xpose.msra.mxu0 0
    %102 = vmatprep.subr.bf16.mxu0 0
    %103 = vmatpush1.bf16.xpose.msra.mxu0 0
    %104 = vmatprep.subr.bf16.mxu0 0
    %105 = vmatpush1.bf16.xpose.msra.mxu0 0
    %106 = vmatprep.subr.bf16.mxu0 0
    %107 = vmatpush1.bf16.xpose.msra.mxu0 0
    %108 = vmatprep.subr.bf16.mxu0 0
    %109 = vmatpush1.bf16.xpose.msra.mxu0 0
    %110 = vmatprep.subr.bf16.mxu0 0
    %111 = vmatpush1.bf16.xpose.msra.mxu0 %v94
    %112 = vmatprep.subr.bf16.mxu0 0
    %113 = vmatpush2.bf16.xpose.msra.mxu0 0
    %114 = vmatprep.subr.bf16.mxu0 0
    %115 = vmatpush2.bf16.xpose.msra.mxu0 0
    %116 = vmatprep.subr.bf16.mxu0 0
    %117 = vmatpush2.bf16.xpose.msra.mxu0 0
    %118 = vmatprep.subr.bf16.mxu0 0
    %119 = vmatpush2.bf16.xpose.msra.mxu0 0
    %120 = vmatprep.subr.bf16.mxu0 0
    %121 = vmatpush2.bf16.xpose.msra.mxu0 0
    %122 = vmatprep.subr.bf16.mxu0 0
    %123 = vmatpush2.bf16.xpose.msra.mxu0 0
    %124 = vmatprep.subr.bf16.mxu0 0
    %125 = vmatpush2.bf16.xpose.msra.mxu0 0
    %126 = vmatprep.subr.bf16.mxu0 0
    %127 = vmatpush2.bf16.xpose.msra.mxu0 0
    %128 = vmatprep.mubr.bf16.mxu0 0
    %129 = vmatmul.mubr.bf16.gmra.mxu0 %v91
    %v130 = vpop.f32.mrf.mxu0
    %v131 = vadd.f32 0.0, %v130
    %v132 = vpop.f32.mrf.mxu0
    %v133 = vpop.f32.mrf.mxu0
    %v134 = vpop.f32.mrf.mxu0
    %135 = vdwg.mxu0
    %v136 = vlaneseq
    %v137 = vshrl.u32 %v136, 7
    %v138 = vsub.s32 0, %v137
    %v139 = vrot.slane %v88, %v138
    %v140 = vmul.f32 %v131, %v139
    %vm141 = vcmask 64512
    %v142 = vsel %vm141, %v140, -inf
    %v143 = vrot.slane %v142, 4
    %v144 = vmax.f32 %v142, %v143
    %v145 = vrot.slane %v144, 2
    %v146 = vmax.f32 %v144, %v145
    %v147 = vrot.slane %v146, 1
    %v148 = vmax.f32 %v146, %v147
    %v149 = vsub.f32 %v140, %v148
    %v150 = vmul.f32 %v149, 1.442695
    %v151 = vpow.pop %v150
    %v152 = vsel %vm141, %v151, 0.0
    %v153 = vrot.slane %v152, 4
    %v154 = vadd.f32 %v152, %v153
    %v155 = vrot.slane %v154, 2
    %v156 = vadd.f32 %v154, %v155
    %v157 = vrot.slane %v156, 1
    %v158 = vadd.f32 %v156, %v157
    %v159 = vrcp.pop %v158
    %v160 = vmul.f32 %v151, %v159
    %v161 = vlaneseq
    %v162 = vand.u32 %v161, 127
    %s163 = smul.u32 0, 8
    %v164 = vstv %s163
    %v165 = vadd.s32 %v162, %v164
    %vm166 = vcmp.lt.s32.totalorder %v165, 2
    %v167 = vsub.f32 1.0, %v160
    %v168 = vsel %vm166, %v167, 0.0
    %vm169 = vcmask 64519
    %170 = vst.msk [vmem:[#allocation7 - $0x7] sm:$0x80] %vm169, %v168
    // Predicated region
    $region18: #{tpu_custom_call.1} parent=1 // pred_check
      _
    $region19: #{tpu_custom_call.1} parent=1 // pred_check_branch
      %172 = sbr.rel (0) target = $region21
    $region20: #{tpu_custom_call.1} parent=1 // pred_region
      %s174 = ssub.s32 16, 16
      %175 = vsyncadd [#allocation4], %s174
      %s177 = sshll.u32 [#allocation7], 4
      %s178 = int_to_ptr.vmem [resolvable:$true] %s177
      %180 = dma.vmem_to_hbm [thread:$0]  %s178, 16, %s2, [#allocation4]
    $region21: #{tpu_custom_call.1} parent=1 // pred_fallthru
      _
    // Predicated region
    $region22: #{tpu_custom_call.1} parent=1 // pred_check
      _
    $region23: #{tpu_custom_call.1} parent=1 // pred_check_branch
      %182 = sbr.rel (0) target = $region25
    $region24: #{tpu_custom_call.1} parent=1 // pred_region
      %183 = dma.done [#allocation4], 16
    $region25: #{tpu_custom_call.1} parent=1 // pred_fallthru
      _
    %184 = vsyncpa [#allocation3], 1
    %185 = vsyncpa [#allocation6], 1
    %186 = vsyncpa [#allocation4], 1

</llo_original>
